<compile_context>
chip_gen: v7x
topology: tpu7x:2x2x1
jax: 0.10.0
libtpu: 0.0.40
codegen_flags: <defaults>
</compile_context>

<pallas_src>
import functools

import jax
import jax.numpy as jnp
from jax import lax
from jax.experimental import pallas as pl
from jax.experimental.pallas import tpu as pltpu

LANES = 128                     # lane width
GROUP = 16                      # sublane group; (16,128) f32 = 8 KiB
TILE_GROUPS = 256               # block = (256,16,128) f32 = 2 MiB per input
SUB_GROUPS = 16                 # fori_loop sub-slab = (16,16,128) = 128 KiB/input
SINGLE_BLOCK_MAX_ELEMS = 128 * 1024   # <= 512 KiB/input f32 -> one-step kernel


def _nmsle_single_block_kernel(pred_ref, label_ref, out_ref, *, inv_n):
    """Whole input in one VMEM block: both sums + final ratio in one step."""
    lp = jnp.log(pred_ref[...].astype(jnp.float32) + 1.0)
    ll = jnp.log(label_ref[...].astype(jnp.float32) + 1.0)
    d = lp - ll
    num = jnp.sum(d * d) * jnp.float32(inv_n)     # mean squared log error
    den = jnp.sum(lp * lp)                        # sum(log(pred+1)^2)
    out_ref[0, 0] = num / den


def _nmsle_tiled_kernel(pred_ref, label_ref, ssd_ref, den_ref, *,
                        g_valid, tile_groups, sub_groups, n_sub):
    """Streaming reduction over (tile_groups, GROUP, LANES) blocks.

    ssd_ref / den_ref are (1, GROUP, LANES) resident output blocks (one per
    parallel split) used directly as accumulators; the per-step work is done in
    sub-slabs so VMEM intermediates stay bounded while the DMA tile is large.
    """
    c = pl.program_id(0)                          # parallel split (megacore)
    i = pl.program_id(1)                          # carried reduction axis
    steps = pl.num_programs(1)
    # Logical (unclamped) global group index of this block's first row.
    block_start = (c * steps + i) * tile_groups

    @pl.when(i == 0)
    def _():
        ssd_ref[...] = jnp.zeros_like(ssd_ref)
        den_ref[...] = jnp.zeros_like(den_ref)

    def accumulate(masked):
        def body(s, carry):
            start = pl.multiple_of(s * sub_groups, sub_groups)
            p = pred_ref[pl.ds(start, sub_groups)].astype(jnp.float32)
            l = label_ref[pl.ds(start, sub_groups)].astype(jnp.float32)
            lp = jnp.log(p + 1.0)
            ll = jnp.log(l + 1.0)
            d = lp - ll
            dd = d * d
            pp = lp * lp
            if masked:
                # Row-id mask for the ragged last / overshot block: rows whose
                # global group index is >= the true group count contribute 0.
                gid = (block_start + start
                       + lax.broadcasted_iota(jnp.int32, dd.shape, 0))
                keep = gid < g_valid
                dd = jnp.where(keep, dd, 0.0)
                pp = jnp.where(keep, pp, 0.0)
            # Leading-axis reduce of the sub-slab -> pure elementwise VPU adds.
            ssd_ref[0] = ssd_ref[0] + jnp.sum(dd, axis=0)
            den_ref[0] = den_ref[0] + jnp.sum(pp, axis=0)
            return carry
        lax.fori_loop(0, n_sub, body, 0, unroll=True)

    full = block_start + tile_groups <= g_valid

    @pl.when(full)                                # common case: no mask cost
    def _():
        accumulate(masked=False)

    @pl.when(jnp.logical_not(full))               # ragged / overshot block
    def _():
        accumulate(masked=True)


def nmsle_loss(pred, label):
    """Pallas TPU implementation of NMSLELoss.forward(pred, label)."""
    assert pred.shape == label.shape, "pred/label must have the same shape"
    n = pred.size
    inv_n = 1.0 / float(n)
    flat_p = pred.reshape(-1)
    flat_l = label.reshape(-1)

    chunk = GROUP * LANES                         # 2048 elements
    padded = pl.cdiv(n, chunk) * chunk
    if padded != n:
        # Pads at most 2047 zeros; only costs an HBM copy when n is not already
        # a 2048 multiple.  Zeros are inert: log(0+1)=0 contributes nothing to
        # either sum and the mean divides by the true element count n.
        flat_p = jnp.pad(flat_p, (0, padded - n))
        flat_l = jnp.pad(flat_l, (0, padded - n))

    if n <= SINGLE_BLOCK_MAX_ELEMS:
        # ---- single-block, single-step path (no grid accumulation) ----
        m = padded // LANES                       # multiple of 16 -> clean (8,128)
        p2d = flat_p.reshape(m, LANES)
        l2d = flat_l.reshape(m, LANES)
        kernel = functools.partial(_nmsle_single_block_kernel, inv_n=inv_n)
        out = pl.pallas_call(
            kernel,
            out_shape=jax.ShapeDtypeStruct((1, 1), jnp.float32),
            grid_spec=pltpu.PrefetchScalarGridSpec(
                num_scalar_prefetch=0,
                grid=(1,),
                in_specs=[pl.BlockSpec((m, LANES), lambda i: (0, 0)),
                          pl.BlockSpec((m, LANES), lambda i: (0, 0))],
                out_specs=pl.BlockSpec(memory_space=pltpu.MemorySpace.SMEM),
            ),
            compiler_params=pltpu.CompilerParams(
                dimension_semantics=("arbitrary",)),
        )(p2d, l2d)
        return out[0, 0]

    # ---- tiled streaming-reduction path ----
    g = padded // chunk                           # number of (GROUP, LANES) groups
    p3d = flat_p.reshape(g, GROUP, LANES)
    l3d = flat_l.reshape(g, GROUP, LANES)
    g_blocks = pl.cdiv(g, TILE_GROUPS)
    nsplit = 2 if g_blocks >= 2 else 1            # 2-TC split on v7x; harmless on 1-TC
    steps = pl.cdiv(g_blocks, nsplit)

    def in_map(c, i):
        # Clamp so an overshoot step (nsplit*steps > g_blocks) re-reads the last
        # real block; its contribution is masked to zero inside the kernel.
        return (jnp.minimum(c * steps + i, g_blocks - 1), 0, 0)

    kernel = functools.partial(
        _nmsle_tiled_kernel, g_valid=g, tile_groups=TILE_GROUPS,
        sub_groups=SUB_GROUPS, n_sub=TILE_GROUPS // SUB_GROUPS)

    ssd, den = pl.pallas_call(
        kernel,
        out_shape=(jax.ShapeDtypeStruct((nsplit, GROUP, LANES), jnp.float32),
                   jax.ShapeDtypeStruct((nsplit, GROUP, LANES), jnp.float32)),
        grid_spec=pltpu.PrefetchScalarGridSpec(
            num_scalar_prefetch=0,
            grid=(nsplit, steps),
            in_specs=[pl.BlockSpec((TILE_GROUPS, GROUP, LANES), in_map),
                      pl.BlockSpec((TILE_GROUPS, GROUP, LANES), in_map)],
            out_specs=[pl.BlockSpec((1, GROUP, LANES), lambda c, i: (c, 0, 0)),
                       pl.BlockSpec((1, GROUP, LANES), lambda c, i: (c, 0, 0))],
        ),
        compiler_params=pltpu.CompilerParams(
            dimension_semantics=("parallel", "arbitrary"),
            vmem_limit_bytes=32 * 1024 * 1024,
        ),
    )(p3d, l3d)
    # Tiny final combine (2 * nsplit * 2048 floats) done in the wrapper.
    num = jnp.sum(ssd) * jnp.float32(inv_n)
    return num / jnp.sum(den)


def _reference(pred, label):
    lp = jnp.log(pred.astype(jnp.float32) + 1.0)
    ll = jnp.log(label.astype(jnp.float32) + 1.0)
    msle = jnp.mean(jnp.square(lp - ll))
    return msle / jnp.sum(jnp.square(lp))


if __name__ == "__main__":
    key = jax.random.PRNGKey(0)
    k1, k2, k3, k4, k5, k6 = jax.random.split(key, 6)

    # Small NCHW input (single-block path). Values > 0 so log(x+1) is finite.
    shape = (2, 4, 16, 16)
    pred = jax.random.uniform(k1, shape, dtype=jnp.float32, minval=0.1, maxval=2.0)
    label = jax.random.uniform(k2, shape, dtype=jnp.float32, minval=0.1, maxval=2.0)
    out = jax.block_until_ready(nmsle_loss(pred, label))
    ref = _reference(pred, label)
    assert jnp.allclose(out, ref, rtol=1e-5, atol=1e-6), (out, ref)

    # Ragged small input: exercises the inert zero-pad on the single-block path.
    shape1 = (3, 5, 7, 11)
    pred1 = jax.random.uniform(k3, shape1, dtype=jnp.float32, minval=0.1, maxval=2.0)
    label1 = jax.random.uniform(k4, shape1, dtype=jnp.float32, minval=0.1, maxval=2.0)
    out1 = jax.block_until_ready(nmsle_loss(pred1, label1))
    ref1 = _reference(pred1, label1)
    assert jnp.allclose(out1, ref1, rtol=1e-5, atol=1e-6), (out1, ref1)

    # Larger input: tiled path with the 2-way parallel split, a ragged last
    # block (520 groups -> blocks of 256/256/8) and one masked overshoot step.
    shape2 = (4, 8, 256, 130)
    pred2 = jax.random.uniform(k5, shape2, dtype=jnp.float32, minval=0.1, maxval=2.0)
    label2 = jax.random.uniform(k6, shape2, dtype=jnp.float32, minval=0.1, maxval=2.0)
    out2 = jax.block_until_ready(nmsle_loss(pred2, label2))
    ref2 = _reference(pred2, label2)
    assert jnp.allclose(out2, ref2, rtol=1e-4, atol=1e-6), (out2, ref2)

    print("KERNEL_OK")
</pallas_src>

<mosaic_0001>
module attributes {stable_mosaic.version = 11 : i64} {
  func.func @_nmsle_single_block_kernel(%arg0: i32, %arg1: memref<16x128xf32, #tpu.memory_space<vmem>>, %arg2: memref<16x128xf32, #tpu.memory_space<vmem>>, %arg3: memref<1x1xf32, #tpu.memory_space<smem>>) attributes {dimension_semantics = [#tpu.dimension_semantics<arbitrary>], iteration_bounds = array<i64: 1>, scalar_prefetch = 0 : i64, scratch_operands = 0 : i64, tpu.core_type = #tpu.core_type<tc>, window_params = [{pipeline_mode = #tpu.pipeline_mode<synchronous>, transform_indices = @transform_0, window_bounds = array<i64: 16, 128>}, {pipeline_mode = #tpu.pipeline_mode<synchronous>, transform_indices = @transform_1, window_bounds = array<i64: 16, 128>}, {transform_indices = @transform_2, window_bounds = array<i64: 1, 1>}]} {
    %c0 = arith.constant 0 : index
    %c0_0 = arith.constant 0 : index
    %0 = vector.load %arg1[%c0, %c0_0] : memref<16x128xf32, #tpu.memory_space<vmem>>, vector<16x128xf32>
    %cst = arith.constant 1.000000e+00 : f32
    %1 = vector.broadcast %cst : f32 to vector<16x128xf32>
    %2 = arith.addf %0, %1 : vector<16x128xf32>
    %3 = math.log %2 : vector<16x128xf32>
    %c0_1 = arith.constant 0 : index
    %c0_2 = arith.constant 0 : index
    %4 = vector.load %arg2[%c0_1, %c0_2] : memref<16x128xf32, #tpu.memory_space<vmem>>, vector<16x128xf32>
    %cst_3 = arith.constant 1.000000e+00 : f32
    %5 = vector.broadcast %cst_3 : f32 to vector<16x128xf32>
    %6 = arith.addf %4, %5 : vector<16x128xf32>
    %7 = math.log %6 : vector<16x128xf32>
    %8 = arith.subf %3, %7 : vector<16x128xf32>
    %9 = arith.mulf %8, %8 : vector<16x128xf32>
    %10 = vector.shape_cast %9 : vector<16x128xf32> to vector<1x16x128xf32>
    %cst_4 = arith.constant dense<0.000000e+00> : vector<1xf32>
    %11 = vector.multi_reduction <add>, %10, %cst_4 [1, 2] : vector<1x16x128xf32> to vector<1xf32>
    %12 = vector.shape_cast %11 : vector<1xf32> to vector<1x1x1xf32>
    %13 = vector.extract %12[0, 0, 0] : f32 from vector<1x1x1xf32>
    %cst_5 = arith.constant 4.8828125E-4 : f32
    %14 = arith.mulf %13, %cst_5 : f32
    %15 = arith.mulf %3, %3 : vector<16x128xf32>
    %16 = vector.shape_cast %15 : vector<16x128xf32> to vector<1x16x128xf32>
    %cst_6 = arith.constant dense<0.000000e+00> : vector<1xf32>
    %17 = vector.multi_reduction <add>, %16, %cst_6 [1, 2] : vector<1x16x128xf32> to vector<1xf32>
    %18 = vector.shape_cast %17 : vector<1xf32> to vector<1x1x1xf32>
    %19 = vector.extract %18[0, 0, 0] : f32 from vector<1x1x1xf32>
    %20 = arith.divf %14, %19 : f32
    %c0_7 = arith.constant 0 : index
    %c0_8 = arith.constant 0 : index
    %21 = memref.load %arg3[%c0_7, %c0_8] : memref<1x1xf32, #tpu.memory_space<smem>>
    memref.store %20, %arg3[%c0_7, %c0_8] : memref<1x1xf32, #tpu.memory_space<smem>>
    return
  }
  func.func @transform_0(%arg0: i32) -> (i32, i32) {
    %c0_i32 = arith.constant 0 : i32
    %c0_i32_0 = arith.constant 0 : i32
    %c0_i32_1 = arith.constant 0 : i32
    return %c0_i32, %c0_i32_0 : i32, i32
  }
  func.func @transform_1(%arg0: i32) -> (i32, i32) {
    %c0_i32 = arith.constant 0 : i32
    %c0_i32_0 = arith.constant 0 : i32
    %c0_i32_1 = arith.constant 0 : i32
    return %c0_i32, %c0_i32_0 : i32, i32
  }
  func.func @transform_2(%arg0: i32) -> (i32, i32) {
    %c0_i32 = arith.constant 0 : i32
    %c0_i32_0 = arith.constant 0 : i32
    %c0_i32_1 = arith.constant 0 : i32
    return %c0_i32, %c0_i32_0 : i32, i32
  }
}

</mosaic_0001>

<llo_original>
// kernel: tpu_custom_call.1
$region0: #{tpu_custom_call.1}
  #allocation0 [shape = 'u32[]', space=smem, size = 0x4, offset = 0x4, fixed_abs, tag = 'smem constant byte address 0x4 - core index']
  #allocation1 [shape = 'u32[144,128]{1,0:T(1,128)}', space=vmem, size = 0x12000, scoped, tag = 'internal scratch']
  %s0 = inlined_call_operand.hbm [shape: f32[16,128], index: 0, kind: input, shape index: {}]
  %s1 = inlined_call_operand.hbm [shape: f32[16,128], index: 1, kind: input, shape index: {}]
  %s2 = inlined_call_operand.hbm [shape: f32[1,1], index: 2, kind: output, shape index: {}]
  %s3 = sld [smem:[#allocation0]]
  $region26: #{tpu_custom_call.1} parent=0
    _
  %s5 = ssub.s32 1, %s3
  %s6 = scalar_select 0, %s5, %s3
  $region1: #{tpu_custom_call.1} parent=0
    #allocation2 [shape = 'u8[8192]{0}', space=vmem, size = 0x2000, scoped, tag = 'input window, operand 0, single buffered']
    #allocation3 [shape = 's32[1]{0}', space=sflag, size = 0x4, scoped, tag = 'scoped memory for tpu_custom_call.1']
    #allocation4 [shape = 's32[1]{0}', space=sflag, size = 0x4, scoped, tag = 'scoped memory for tpu_custom_call.1']
    #allocation5 [shape = 'u8[8192]{0}', space=vmem, size = 0x2000, scoped, tag = 'input window, operand 1, single buffered']
    #allocation6 [shape = 's32[1]{0}', space=sflag, size = 0x4, scoped, tag = 'scoped memory for tpu_custom_call.1']
    #allocation7 [shape = 'u8[512]{0}', space=smem, size = 0x200, scoped, tag = 'output window, operand 0, single buffered']
    %7 = vsyncpa [#allocation3], 0
    %8 = vsyncpa [#allocation6], 0
    %9 = vsyncpa [#allocation4], 0
    // Predicated region
    $region2: #{tpu_custom_call.1} parent=1 // pred_check
      _
    $region3: #{tpu_custom_call.1} parent=1 // pred_check_branch
      %11 = sbr.rel (0) target = $region5
    $region4: #{tpu_custom_call.1} parent=1 // pred_region
      %s13 = ssub.s32 256, 256
      %14 = vsyncadd [#allocation3], %s13
      %s15 = sshll.u32 [#allocation2], 4
      %s16 = int_to_ptr.vmem [resolvable:$true] %s15
      %21 = dma.hbm_to_vmem [thread:$0]  %s0, 256, %s16, [#allocation3], 128, 128, 8
    $region5: #{tpu_custom_call.1} parent=1 // pred_fallthru
      _
    // Predicated region
    $region6: #{tpu_custom_call.1} parent=1 // pred_check
      _
    $region7: #{tpu_custom_call.1} parent=1 // pred_check_branch
      %23 = sbr.rel (0) target = $region9
    $region8: #{tpu_custom_call.1} parent=1 // pred_region
      %s25 = ssub.s32 256, 256
      %26 = vsyncadd [#allocation6], %s25
      %s27 = sshll.u32 [#allocation5], 4
      %s28 = int_to_ptr.vmem [resolvable:$true] %s27
      %33 = dma.hbm_to_vmem [thread:$0]  %s1, 256, %s28, [#allocation6], 128, 128, 8
    $region9: #{tpu_custom_call.1} parent=1 // pred_fallthru
      _
    // Predicated region
    $region10: #{tpu_custom_call.1} parent=1 // pred_check
      _
    $region11: #{tpu_custom_call.1} parent=1 // pred_check_branch
      %35 = sbr.rel (0) target = $region13
    $region12: #{tpu_custom_call.1} parent=1 // pred_region
      %36 = dma.done [#allocation3], 256
    $region13: #{tpu_custom_call.1} parent=1 // pred_fallthru
      _
    // Predicated region
    $region14: #{tpu_custom_call.1} parent=1 // pred_check
      _
    $region15: #{tpu_custom_call.1} parent=1 // pred_check_branch
      %38 = sbr.rel (0) target = $region17
    $region16: #{tpu_custom_call.1} parent=1 // pred_region
      %39 = dma.done [#allocation6], 256
    $region17: #{tpu_custom_call.1} parent=1 // pred_fallthru
      _
    %v40 = vld [vmem:[#allocation2] sm:$0xff]
    %v41 = vld [vmem:[#allocation2 + $0x8] sm:$0xff]
    %v42 = vadd.f32 %v40, 1.0
    %v43 = vadd.f32 %v41, 1.0
    %v44 = vlog2.pop %v42
    %v45 = vmul.f32 %v44, 0.6931472
    %v46 = vlog2.pop %v43
    %v47 = vmul.f32 %v46, 0.6931472
    %v48 = vld [vmem:[#allocation5] sm:$0xff]
    %v49 = vld [vmem:[#allocation5 + $0x8] sm:$0xff]
    %v50 = vadd.f32 %v48, 1.0
    %v51 = vadd.f32 %v49, 1.0
    %v52 = vlog2.pop %v50
    %v53 = vmul.f32 %v52, 0.6931472
    %v54 = vlog2.pop %v51
    %v55 = vmul.f32 %v54, 0.6931472
    %v56 = vsub.f32 %v45, %v53
    %v57 = vsub.f32 %v47, %v55
    %v58 = vmul.f32 %v56, %v56
    %v59 = vmul.f32 %v57, %v57
    %v60 = vadd.f32 %v58, %v59
    %61 = vadd.xlane.f32.xlu0 %v60
    %v62 = vpop.xlane.xlu0 %61
    %v63 = vrot.slane %v62, 4
    %v64 = vadd.f32 %v62, %v63
    %v65 = vrot.slane %v64, 2
    %v66 = vadd.f32 %v64, %v65
    %v67 = vrot.slane %v66, 1
    %v68 = vadd.f32 %v66, %v67
    %s69 = vtos %v68
    %s70 = smul.f32 %s69, 0.00048828125
    %v71 = vmul.f32 %v45, %v45
    %v72 = vmul.f32 %v47, %v47
    %v73 = vadd.f32 %v71, %v72
    %74 = vadd.xlane.f32.xlu0 %v73
    %v75 = vpop.xlane.xlu0 %74
    %v76 = vrot.slane %v75, 4
    %v77 = vadd.f32 %v75, %v76
    %v78 = vrot.slane %v77, 2
    %v79 = vadd.f32 %v77, %v78
    %v80 = vrot.slane %v79, 1
    %v81 = vadd.f32 %v79, %v80
    %s82 = vtos %v81
    %v83 = vstv %s82
    %v84 = vrcp.pop %v83
    %s85 = vtos %v84
    %s86 = smul.f32 %s70, %s85
    %s87 = scalar_lea.smem [#allocation7], 0
    %88 = sst [smem:[%s87]] %s86
    // Predicated region
    $region18: #{tpu_custom_call.1} parent=1 // pred_check
      _
    $region19: #{tpu_custom_call.1} parent=1 // pred_check_branch
      %90 = sbr.rel (0) target = $region21
    $region20: #{tpu_custom_call.1} parent=1 // pred_region
      %s92 = ssub.s32 16, 16
      %93 = vsyncadd [#allocation4], %s92
      %96 = dma.smem_to_hbm [#allocation7], 16, %s2, [#allocation4]
    $region21: #{tpu_custom_call.1} parent=1 // pred_fallthru
      _
    // Predicated region
    $region22: #{tpu_custom_call.1} parent=1 // pred_check
      _
    $region23: #{tpu_custom_call.1} parent=1 // pred_check_branch
      %98 = sbr.rel (0) target = $region25
    $region24: #{tpu_custom_call.1} parent=1 // pred_region
      %99 = dma.done [#allocation4], 16
    $region25: #{tpu_custom_call.1} parent=1 // pred_fallthru
      _
    %100 = sfence
    %101 = vsyncpa [#allocation3], 1
    %102 = vsyncpa [#allocation6], 1
    %103 = vsyncpa [#allocation4], 1

</llo_original>
